<compile_context>
chip_gen: v5e
topology: v5e:2x2
jax: 0.10.0
libtpu: 0.0.40
codegen_flags: <defaults>
</compile_context>

<pallas_src>
import functools

import jax
import jax.numpy as jnp
from jax import lax
from jax.experimental import pallas as pl
from jax.experimental.pallas import tpu as pltpu


def _round_up(x, m):
    return ((x + m - 1) // m) * m


def _vmem_per_step(tm, tn, d, cbytes):
    # Rough per-grid-step VMEM footprint:
    #   double-buffered im block + double-buffered s block
    #   + a handful of f32 (tm, tn) temporaries (scores / cost_s / cost_im /
    #     mask / iota) + small diag / id / output blocks.
    return (2 * tm * d * cbytes
            + 2 * tn * d * cbytes
            + 6 * tm * tn * 4
            + 8 * (tm + tn) * 4)


def _contrastive_loss_kernel(*refs, margin, max_violation, use_ids,
                             valid_b, padded):
    im_ref, s_ref, diag_r_ref, diag_c_ref = refs[:4]
    k = 4
    if use_ids:
        ids_r_ref, ids_c_ref = refs[4:6]
        k = 6
    if max_violation:
        rowmax_ref, colmax_ref = refs[k], refs[k + 1]
    else:
        colsum_ref = refs[k]

    i = pl.program_id(0)          # row tile index
    j = pl.program_id(1)          # col tile index

    im = im_ref[...]              # (TM, D), compute dtype (bf16)
    s = s_ref[...]                # (TN, D)
    tm, tn = im.shape[0], s.shape[0]

    # scores tile = im_blk @ s_blk.T — contract dim 1 of both on the MXU,
    # f32 accumulation.  No transpose of s is ever materialized.
    scores = lax.dot_general(
        im, s, dimension_numbers=(((1,), (1,)), ((), ())),
        preferred_element_type=jnp.float32)              # (TM, TN) f32

    diag_r = diag_r_ref[...]      # (TM, 1) f32
    diag_c = diag_c_ref[...]      # (1, TN) f32

    cost_s = jnp.maximum(margin + scores - diag_r, 0.0)   # caption retrieval
    cost_im = jnp.maximum(margin + scores - diag_c, 0.0)  # image retrieval

    need_iota = (not use_ids) or padded
    if need_iota:
        r = lax.broadcasted_iota(jnp.int32, (tm, tn), 0) + i * tm
        c = lax.broadcasted_iota(jnp.int32, (tm, tn), 1) + j * tn
    if use_ids:
        mask = ids_r_ref[...] == ids_c_ref[...]            # (TM, TN) bool
    else:
        mask = r == c
    if padded:
        mask = jnp.logical_or(mask,
                              jnp.logical_or(r >= valid_b, c >= valid_b))

    cost_s = jnp.where(mask, 0.0, cost_s)
    cost_im = jnp.where(mask, 0.0, cost_im)

    if max_violation:
        row_m = jnp.max(cost_s, axis=1, keepdims=True)     # (TM, 1)
        col_m = jnp.max(cost_im, axis=0, keepdims=True)    # (1, TN)

        # Per-(i, j) disjoint col-max partial; reduced over row tiles in the
        # wrapper (keeps the row axis safely "parallel").
        colmax_ref[0] = col_m

        # Row-max accumulated across j into the resident output block for i.
        @pl.when(j == 0)
        def _():
            rowmax_ref[...] = row_m

        @pl.when(j > 0)
        def _():
            rowmax_ref[...] = jnp.maximum(rowmax_ref[...], row_m)
    else:
        # Lane-dense per-tile partial column sums: sublane-only reduce, no
        # cross-lane sum and no serialized scalar accumulator per tile.
        colsum_ref[0] = jnp.sum(cost_s + cost_im, axis=0, keepdims=True)


def contrastive_loss(im, s, img_ids=None, *, margin=0.2, max_violation=False,
                     mask_repeat=False, compute_dtype=jnp.bfloat16,
                     block_m=None, block_n=None):
    """Pallas TPU implementation of ContrastiveLoss.forward (returns scalar loss)."""
    im = jnp.asarray(im)
    s = jnp.asarray(s)
    B, D = im.shape
    assert s.shape == (B, D)
    use_ids = bool(mask_repeat) and (img_ids is not None)

    # Stream & multiply in bf16 (MXU-native rate, half the HBM traffic);
    # accumulate in f32.
    cdt = jnp.dtype(compute_dtype)
    cbytes = cdt.itemsize
    im_c = im.astype(cdt)
    s_c = s.astype(cdt)

    # --- VMEM / D / dtype aware tile selection ------------------------------
    try:
        vmem_cap = int(pltpu.get_tpu_info().vmem_capacity_bytes)
    except Exception:
        vmem_cap = 64 * 1024 * 1024        # conservative (v7x per-TC)
    budget = int(vmem_cap * 0.6)

    if block_n is None:
        tn = 256 if B > 256 else _round_up(B, 128)
    else:
        tn = int(block_n)
    assert tn % 128 == 0

    if block_m is None:
        b_min = _round_up(B, tn)
        tm = tn
        for m in (8192, 4096, 2048, 1024, 512, 256, 128):
            if (m % tn == 0 and m <= b_min
                    and _vmem_per_step(m, tn, D, cbytes) <= budget):
                tm = m
                break
    else:
        tm = int(block_m)
    assert tm >= tn and tm % tn == 0 and tm % 8 == 0

    Bp = _round_up(B, tm)
    gi, gj = Bp // tm, Bp // tn
    padded = Bp != B

    if padded:
        pad = Bp - B
        im_c = jnp.pad(im_c, ((0, pad), (0, 0)))
        s_c = jnp.pad(s_c, ((0, pad), (0, 0)))

    # diag(im @ s.T)[k] == dot(im[k], s[k]); computed from the bf16-cast
    # operands in f32 so it is consistent with the MXU scores.  O(B*D),
    # negligible next to the O(B^2*D) kernel matmul.
    diag = jnp.sum(im_c.astype(jnp.float32) * s_c.astype(jnp.float32), axis=-1)
    diag_row = diag.reshape(Bp, 1)
    diag_col = diag.reshape(1, Bp)

    in_specs = [
        pl.BlockSpec((tm, D), lambda i, j: (i, 0)),    # im rows (resident over j)
        pl.BlockSpec((tn, D), lambda i, j: (j, 0)),    # s rows for this col tile
        pl.BlockSpec((tm, 1), lambda i, j: (i, 0)),    # diag for rows
        pl.BlockSpec((1, tn), lambda i, j: (0, j)),    # diag for cols
    ]
    args = [im_c, s_c, diag_row, diag_col]

    if use_ids:
        ids = jnp.asarray(img_ids, dtype=jnp.int32).reshape(B)
        if padded:
            ids = jnp.pad(ids, (0, Bp - B), constant_values=-1)
        in_specs += [
            pl.BlockSpec((tm, 1), lambda i, j: (i, 0)),
            pl.BlockSpec((1, tn), lambda i, j: (0, j)),
        ]
        args += [ids.reshape(Bp, 1), ids.reshape(1, Bp)]

    if max_violation:
        out_shape = (jax.ShapeDtypeStruct((Bp, 1), jnp.float32),
                     jax.ShapeDtypeStruct((gi, 1, Bp), jnp.float32))
        out_specs = (pl.BlockSpec((tm, 1), lambda i, j: (i, 0)),
                     pl.BlockSpec((1, 1, tn), lambda i, j: (i, 0, j)))
    else:
        out_shape = jax.ShapeDtypeStruct((gi, 1, Bp), jnp.float32)
        out_specs = pl.BlockSpec((1, 1, tn), lambda i, j: (i, 0, j))

    kernel = functools.partial(
        _contrastive_loss_kernel,
        margin=float(margin),
        max_violation=bool(max_violation),
        use_ids=use_ids,
        valid_b=B,
        padded=padded,
    )

    cost = pl.CostEstimate(
        flops=2 * Bp * Bp * D + 10 * Bp * Bp,
        transcendentals=0,
        bytes_accessed=(1 + gi) * Bp * D * cbytes + 2 * Bp * 4
        + (gi * Bp + Bp) * 4,
    )

    out = pl.pallas_call(
        kernel,
        out_shape=out_shape,
        grid=(gi, gj),
        in_specs=in_specs,
        out_specs=out_specs,
        compiler_params=pltpu.CompilerParams(
            # Row tiles write disjoint outputs -> "parallel" lets v7x shard
            # the row axis across its two TensorCores.  The col axis carries
            # the row-max accumulation, so it stays "arbitrary".
            dimension_semantics=("parallel", "arbitrary"),
            vmem_limit_bytes=int(vmem_cap * 0.85),
        ),
        cost_estimate=cost,
    )(*args)

    # Tiny O(B) finish in plain JAX; padded rows/cols contribute exact zeros.
    if max_violation:
        rowmax, colmax_part = out
        return rowmax.sum() + colmax_part.max(axis=0).sum()
    return out.sum()


def _reference_loss(im, s, img_ids, margin, max_violation, mask_repeat):
    """Pure-JAX f32 reference mirroring the PyTorch forward."""
    im = jnp.asarray(im, dtype=jnp.float32)
    s = jnp.asarray(s, dtype=jnp.float32)
    scores = im @ s.T
    diag = jnp.diag(scores)[:, None]
    cost_s = jnp.maximum(margin + scores - diag, 0.0)
    cost_im = jnp.maximum(margin + scores - diag.T, 0.0)
    if not mask_repeat:
        mask = jnp.eye(scores.shape[0], dtype=bool)
    else:
        img_ids = jnp.asarray(img_ids)
        mask = img_ids[:, None] == img_ids[None, :]
    cost_s = jnp.where(mask, 0.0, cost_s)
    cost_im = jnp.where(mask, 0.0, cost_im)
    if max_violation:
        return jnp.max(cost_s, axis=1).sum() + jnp.max(cost_im, axis=0).sum()
    return cost_s.sum() + cost_im.sum()


if __name__ == "__main__":
    key = jax.random.PRNGKey(0)
    k1, k2, k3, k4 = jax.random.split(key, 4)

    def check(got, want, name):
        got = float(got)
        want = float(want)
        assert abs(got - want) <= 2e-2 * abs(want) + 5e-2, (name, got, want)

    # Case 1: tiny batch, default sum formulation (mask_repeat=False).
    B, D = 8, 32
    im = jax.random.normal(k1, (B, D), dtype=jnp.float32)
    s = jax.random.normal(k2, (B, D), dtype=jnp.float32)
    loss = contrastive_loss(im, s, margin=0.2, max_violation=False)
    jax.block_until_ready(loss)
    check(loss, _reference_loss(im, s, None, 0.2, False, False), "sum-small")

    # Case 2: max_violation=True with repeated image ids (mask_repeat=True).
    ids = jnp.array([0, 0, 1, 1, 2, 2, 3, 3], dtype=jnp.int32)
    loss_mv = contrastive_loss(im, s, ids, margin=0.2,
                               max_violation=True, mask_repeat=True)
    jax.block_until_ready(loss_mv)
    check(loss_mv, _reference_loss(im, s, ids, 0.2, True, True), "maxv-small")

    # Case 3: batch not divisible by the tile -> wrapper padding + a real
    # multi-tile grid (gi=2, gj=4); exercise both reduction paths.
    B2, D2 = 300, 64
    im2 = jax.random.normal(k3, (B2, D2), dtype=jnp.float32)
    s2 = jax.random.normal(k4, (B2, D2), dtype=jnp.float32)
    loss_t = contrastive_loss(im2, s2, margin=0.2, max_violation=False,
                              block_m=256, block_n=128)
    jax.block_until_ready(loss_t)
    check(loss_t, _reference_loss(im2, s2, None, 0.2, False, False), "sum-tiled")

    ids2 = jnp.concatenate([jnp.arange(150, dtype=jnp.int32)] * 2)
    loss_tmv = contrastive_loss(im2, s2, ids2, margin=0.2, max_violation=True,
                                mask_repeat=True, block_m=256, block_n=128)
    jax.block_until_ready(loss_tmv)
    check(loss_tmv, _reference_loss(im2, s2, ids2, 0.2, True, True), "maxv-tiled")

    print("KERNEL_OK")
</pallas_src>

<mosaic_0001>
module attributes {stable_mosaic.version = 11 : i64} {
  func.func @_contrastive_loss_kernel(%arg0: i32, %arg1: i32, %arg2: memref<128x32xbf16, #tpu.memory_space<vmem>>, %arg3: memref<128x32xbf16, #tpu.memory_space<vmem>>, %arg4: memref<128x1xf32, #tpu.memory_space<vmem>>, %arg5: memref<1x128xf32, #tpu.memory_space<vmem>>, %arg6: memref<1x1x128xf32, #tpu.memory_space<vmem>>) attributes {dimension_semantics = [#tpu.dimension_semantics<parallel>, #tpu.dimension_semantics<arbitrary>], iteration_bounds = array<i64: 1, 1>, scalar_prefetch = 0 : i64, scratch_operands = 0 : i64, tpu.core_type = #tpu.core_type<tc>, window_params = [{transform_indices = @transform_0, window_bounds = array<i64: 128, 32>}, {transform_indices = @transform_1, window_bounds = array<i64: 128, 32>}, {transform_indices = @transform_2, window_bounds = array<i64: 128, 1>}, {transform_indices = @transform_3, window_bounds = array<i64: 1, 128>}, {transform_indices = @transform_4, window_bounds = array<i64: 1, 1, 128>}]} {
    %c0 = arith.constant 0 : index
    %c0_0 = arith.constant 0 : index
    %0 = vector.load %arg2[%c0, %c0_0] : memref<128x32xbf16, #tpu.memory_space<vmem>>, vector<128x32xbf16>
    %c0_1 = arith.constant 0 : index
    %c0_2 = arith.constant 0 : index
    %1 = vector.load %arg3[%c0_1, %c0_2] : memref<128x32xbf16, #tpu.memory_space<vmem>>, vector<128x32xbf16>
    %cst = arith.constant dense<0.000000e+00> : vector<128x128xf32>
    %2 = tpu.matmul %0, %1, %cst {dimension_numbers = #tpu.dot_dimension_numbers<[1], [1], [0], [0], [0, 0, 1, 0], [], []>} : vector<128x32xbf16>, vector<128x32xbf16>, vector<128x128xf32> -> vector<128x128xf32>
    %c0_3 = arith.constant 0 : index
    %c0_4 = arith.constant 0 : index
    %3 = vector.load %arg4[%c0_3, %c0_4] : memref<128x1xf32, #tpu.memory_space<vmem>>, vector<128x1xf32>
    %c0_5 = arith.constant 0 : index
    %c0_6 = arith.constant 0 : index
    %4 = vector.load %arg5[%c0_5, %c0_6] : memref<1x128xf32, #tpu.memory_space<vmem>>, vector<1x128xf32>
    %cst_7 = arith.constant 2.000000e-01 : f32
    %5 = vector.broadcast %cst_7 : f32 to vector<128x128xf32>
    %6 = arith.addf %5, %2 : vector<128x128xf32>
    %7 = vector.broadcast %3 : vector<128x1xf32> to vector<128x128xf32>
    %8 = arith.subf %6, %7 : vector<128x128xf32>
    %cst_8 = arith.constant 0.000000e+00 : f32
    %9 = vector.broadcast %cst_8 : f32 to vector<128x128xf32>
    %10 = arith.maximumf %8, %9 : vector<128x128xf32>
    %cst_9 = arith.constant 2.000000e-01 : f32
    %11 = vector.broadcast %cst_9 : f32 to vector<128x128xf32>
    %12 = arith.addf %11, %2 : vector<128x128xf32>
    %13 = vector.broadcast %4 : vector<1x128xf32> to vector<128x128xf32>
    %14 = arith.subf %12, %13 : vector<128x128xf32>
    %cst_10 = arith.constant 0.000000e+00 : f32
    %15 = vector.broadcast %cst_10 : f32 to vector<128x128xf32>
    %16 = arith.maximumf %14, %15 : vector<128x128xf32>
    %17 = tpu.iota {dimensions = array<i32: 0>} : vector<128x128xi32>
    %c128_i32 = arith.constant 128 : i32
    %18 = arith.muli %arg0, %c128_i32 : i32
    %19 = vector.broadcast %18 : i32 to vector<128x128xi32>
    %20 = arith.addi %17, %19 : vector<128x128xi32>
    %21 = tpu.iota {dimensions = array<i32: 1>} : vector<128x128xi32>
    %c128_i32_11 = arith.constant 128 : i32
    %22 = arith.muli %arg1, %c128_i32_11 : i32
    %23 = vector.broadcast %22 : i32 to vector<128x128xi32>
    %24 = arith.addi %21, %23 : vector<128x128xi32>
    %25 = arith.cmpi eq, %20, %24 : vector<128x128xi32>
    %c8_i32 = arith.constant 8 : i32
    %26 = vector.broadcast %c8_i32 : i32 to vector<128x128xi32>
    %27 = arith.cmpi sge, %20, %26 : vector<128x128xi32>
    %c8_i32_12 = arith.constant 8 : i32
    %28 = vector.broadcast %c8_i32_12 : i32 to vector<128x128xi32>
    %29 = arith.cmpi sge, %24, %28 : vector<128x128xi32>
    %30 = arith.ori %27, %29 : vector<128x128xi1>
    %31 = arith.ori %25, %30 : vector<128x128xi1>
    %cst_13 = arith.constant 0.000000e+00 : f32
    %32 = vector.broadcast %cst_13 : f32 to vector<128x128xf32>
    %33 = arith.select %31, %32, %10 : vector<128x128xi1>, vector<128x128xf32>
    %cst_14 = arith.constant 0.000000e+00 : f32
    %34 = vector.broadcast %cst_14 : f32 to vector<128x128xf32>
    %35 = arith.select %31, %34, %16 : vector<128x128xi1>, vector<128x128xf32>
    %36 = arith.addf %33, %35 : vector<128x128xf32>
    %cst_15 = arith.constant dense<0.000000e+00> : vector<128xf32>
    %37 = vector.multi_reduction <add>, %36, %cst_15 [0] : vector<128x128xf32> to vector<128xf32>
    %38 = vector.shape_cast %37 : vector<128xf32> to vector<1x128xf32>
    %c0_16 = arith.constant 0 : index
    %c0_17 = arith.constant 0 : index
    %c0_18 = arith.constant 0 : index
    %39 = vector.load %arg6[%c0_16, %c0_17, %c0_18] : memref<1x1x128xf32, #tpu.memory_space<vmem>>, vector<1x1x128xf32>
    %40 = vector.shape_cast %39 : vector<1x1x128xf32> to vector<1x128xf32>
    %41 = vector.shape_cast %38 : vector<1x128xf32> to vector<1x1x128xf32>
    tpu.vector_store %arg6[%c0_16, %c0_17, %c0_18], %41 {strides = array<i32>} : memref<1x1x128xf32, #tpu.memory_space<vmem>>, vector<1x1x128xf32>,
    return
  }
  func.func @transform_0(%arg0: i32, %arg1: i32) -> (i32, i32) {
    %c0_i32 = arith.constant 0 : i32
    %c0_i32_0 = arith.constant 0 : i32
    return %arg0, %c0_i32 : i32, i32
  }
  func.func @transform_1(%arg0: i32, %arg1: i32) -> (i32, i32) {
    %c0_i32 = arith.constant 0 : i32
    %c0_i32_0 = arith.constant 0 : i32
    return %arg1, %c0_i32 : i32, i32
  }
  func.func @transform_2(%arg0: i32, %arg1: i32) -> (i32, i32) {
    %c0_i32 = arith.constant 0 : i32
    %c0_i32_0 = arith.constant 0 : i32
    return %arg0, %c0_i32 : i32, i32
  }
  func.func @transform_3(%arg0: i32, %arg1: i32) -> (i32, i32) {
    %c0_i32 = arith.constant 0 : i32
    %c0_i32_0 = arith.constant 0 : i32
    return %c0_i32, %arg1 : i32, i32
  }
  func.func @transform_4(%arg0: i32, %arg1: i32) -> (i32, i32, i32) {
    %c0_i32 = arith.constant 0 : i32
    %c0_i32_0 = arith.constant 0 : i32
    return %arg0, %c0_i32, %arg1 : i32, i32, i32
  }
}

</mosaic_0001>

<llo_original>
// kernel: tpu_custom_call.1
$region0: #{tpu_custom_call.1}
  #allocation0 [shape = 'u32[]', space=smem, size = 0x4, offset = 0x4, fixed_abs, tag = 'smem constant byte address 0x4 - core index']
  #allocation1 [shape = 'u32[72,128]{1,0:T(1,128)}', space=vmem, size = 0x9000, scoped, tag = 'internal scratch']
  %s0 = inlined_call_operand.vmem [shape: bf16[128,32], index: 0, kind: input, shape index: {}]
  %s1 = inlined_call_operand.vmem [shape: bf16[128,32], index: 1, kind: input, shape index: {}]
  %s2 = inlined_call_operand.vmem [shape: f32[128,1], index: 2, kind: input, shape index: {}]
  %s3 = inlined_call_operand.vmem [shape: f32[1,128], index: 3, kind: input, shape index: {}]
  %s4 = inlined_call_operand.hbm [shape: f32[1,1,128], index: 4, kind: output, shape index: {}]
  %s5 = sld [smem:[#allocation0]]
  $region26: #{tpu_custom_call.1} parent=0
    _
  %s7 = ssub.s32 1, %s5
  %s8 = scalar_select 0, %s7, %s5
  $region1: #{tpu_custom_call.1} parent=0
    #allocation2 [shape = 'u8[512]{0}', space=vmem, size = 0x400, scoped, tag = 'output window, operand 0, single buffered']
    #allocation3 [shape = 's32[1]{0}', space=sflag, size = 0x4, scoped, tag = 'scoped memory for tpu_custom_call.1']
    %9 = vsyncpa [#allocation3], 0
    // Predicated region
    $region2: #{tpu_custom_call.1} parent=1 // pred_check
      _
    $region3: #{tpu_custom_call.1} parent=1 // pred_check_branch
      %11 = sbr.rel (0) target = $region5
    $region4: #{tpu_custom_call.1} parent=1 // pred_region
      _
    $region5: #{tpu_custom_call.1} parent=1 // pred_fallthru
      _
    // Predicated region
    $region6: #{tpu_custom_call.1} parent=1 // pred_check
      _
    $region7: #{tpu_custom_call.1} parent=1 // pred_check_branch
      %13 = sbr.rel (0) target = $region9
    $region8: #{tpu_custom_call.1} parent=1 // pred_region
      _
    $region9: #{tpu_custom_call.1} parent=1 // pred_fallthru
      _
    // Predicated region
    $region10: #{tpu_custom_call.1} parent=1 // pred_check
      _
    $region11: #{tpu_custom_call.1} parent=1 // pred_check_branch
      %15 = sbr.rel (0) target = $region13
    $region12: #{tpu_custom_call.1} parent=1 // pred_region
      _
    $region13: #{tpu_custom_call.1} parent=1 // pred_fallthru
      _
    // Predicated region
    $region14: #{tpu_custom_call.1} parent=1 // pred_check
      _
    $region15: #{tpu_custom_call.1} parent=1 // pred_check_branch
      %17 = sbr.rel (0) target = $region17
    $region16: #{tpu_custom_call.1} parent=1 // pred_region
      _
    $region17: #{tpu_custom_call.1} parent=1 // pred_fallthru
      _
    %v18 = vld [vmem:[%s0] sm:$0xf]
    %v19 = vld [vmem:[%s0 + $0x4] sm:$0xf]
    %v20 = vld [vmem:[%s0 + $0x8] sm:$0xf]
    %v21 = vld [vmem:[%s0 + $0xc] sm:$0xf]
    %v22 = vld [vmem:[%s0 + $0x10] sm:$0xf]
    %v23 = vld [vmem:[%s0 + $0x14] sm:$0xf]
    %v24 = vld [vmem:[%s0 + $0x18] sm:$0xf]
    %v25 = vld [vmem:[%s0 + $0x1c] sm:$0xf]
    %v26 = vld [vmem:[%s0 + $0x20] sm:$0xf]
    %v27 = vld [vmem:[%s0 + $0x24] sm:$0xf]
    %v28 = vld [vmem:[%s0 + $0x28] sm:$0xf]
    %v29 = vld [vmem:[%s0 + $0x2c] sm:$0xf]
    %v30 = vld [vmem:[%s0 + $0x30] sm:$0xf]
    %v31 = vld [vmem:[%s0 + $0x34] sm:$0xf]
    %v32 = vld [vmem:[%s0 + $0x38] sm:$0xf]
    %v33 = vld [vmem:[%s0 + $0x3c] sm:$0xf]
    %v34 = vld [vmem:[%s1] sm:$0xf]
    %v35 = vld [vmem:[%s1 + $0x4] sm:$0xf]
    %v36 = vld [vmem:[%s1 + $0x8] sm:$0xf]
    %v37 = vld [vmem:[%s1 + $0xc] sm:$0xf]
    %v38 = vld [vmem:[%s1 + $0x10] sm:$0xf]
    %v39 = vld [vmem:[%s1 + $0x14] sm:$0xf]
    %v40 = vld [vmem:[%s1 + $0x18] sm:$0xf]
    %v41 = vld [vmem:[%s1 + $0x1c] sm:$0xf]
    %v42 = vld [vmem:[%s1 + $0x20] sm:$0xf]
    %v43 = vld [vmem:[%s1 + $0x24] sm:$0xf]
    %v44 = vld [vmem:[%s1 + $0x28] sm:$0xf]
    %v45 = vld [vmem:[%s1 + $0x2c] sm:$0xf]
    %v46 = vld [vmem:[%s1 + $0x30] sm:$0xf]
    %v47 = vld [vmem:[%s1 + $0x34] sm:$0xf]
    %v48 = vld [vmem:[%s1 + $0x38] sm:$0xf]
    %v49 = vld [vmem:[%s1 + $0x3c] sm:$0xf]
    %v50 = vld [vmem:[%s2] sm:$0xff]
    %v51 = vld [vmem:[%s2 + $0x8] sm:$0xff]
    %v52 = vld [vmem:[%s2 + $0x10] sm:$0xff]
    %v53 = vld [vmem:[%s2 + $0x18] sm:$0xff]
    %v54 = vld [vmem:[%s2 + $0x20] sm:$0xff]
    %v55 = vld [vmem:[%s2 + $0x28] sm:$0xff]
    %v56 = vld [vmem:[%s2 + $0x30] sm:$0xff]
    %v57 = vld [vmem:[%s2 + $0x38] sm:$0xff]
    %v58 = vld [vmem:[%s2 + $0x40] sm:$0xff]
    %v59 = vld [vmem:[%s2 + $0x48] sm:$0xff]
    %v60 = vld [vmem:[%s2 + $0x50] sm:$0xff]
    %v61 = vld [vmem:[%s2 + $0x58] sm:$0xff]
    %v62 = vld [vmem:[%s2 + $0x60] sm:$0xff]
    %v63 = vld [vmem:[%s2 + $0x68] sm:$0xff]
    %v64 = vld [vmem:[%s2 + $0x70] sm:$0xff]
    %v65 = vld [vmem:[%s2 + $0x78] sm:$0xff]
    %v66 = vld [vmem:[%s3] sm:$0x1]
    %v83 = vunpack.c.l.b16 %v18
    %v84 = vunpack.c.l.b16 %v19
    %v85 = vunpack.c.l.b16 %v20
    %v86 = vunpack.c.l.b16 %v21
    %v87 = vunpack.c.l.b16 %v22
    %v88 = vunpack.c.l.b16 %v23
    %v89 = vunpack.c.l.b16 %v24
    %v90 = vunpack.c.l.b16 %v25
    %v91 = vunpack.c.l.b16 %v26
    %v92 = vunpack.c.l.b16 %v27
    %v93 = vunpack.c.l.b16 %v28
    %v94 = vunpack.c.l.b16 %v29
    %v95 = vunpack.c.l.b16 %v30
    %v96 = vunpack.c.l.b16 %v31
    %v97 = vunpack.c.l.b16 %v32
    %v98 = vunpack.c.l.b16 %v33
    %v99 = vpack.c.b16 %v84, %v83
    %v100 = vpack.c.b16 %v86, %v85
    %v101 = vpack.c.b16 %v88, %v87
    %v102 = vpack.c.b16 %v90, %v89
    %v103 = vpack.c.b16 %v92, %v91
    %v104 = vpack.c.b16 %v94, %v93
    %v105 = vpack.c.b16 %v96, %v95
    %v106 = vpack.c.b16 %v98, %v97
    %v123 = vunpack.c.l.b16 %v34
    %v124 = vunpack.c.l.b16 %v35
    %v125 = vunpack.c.l.b16 %v36
    %v126 = vunpack.c.l.b16 %v37
    %v127 = vunpack.c.l.b16 %v38
    %v128 = vunpack.c.l.b16 %v39
    %v129 = vunpack.c.l.b16 %v40
    %v130 = vunpack.c.l.b16 %v41
    %v131 = vunpack.c.l.b16 %v42
    %v132 = vunpack.c.l.b16 %v43
    %v133 = vunpack.c.l.b16 %v44
    %v134 = vunpack.c.l.b16 %v45
    %v135 = vunpack.c.l.b16 %v46
    %v136 = vunpack.c.l.b16 %v47
    %v137 = vunpack.c.l.b16 %v48
    %v138 = vunpack.c.l.b16 %v49
    %v139 = vpack.c.b16 %v124, %v123
    %v140 = vpack.c.b16 %v126, %v125
    %v141 = vpack.c.b16 %v128, %v127
    %v142 = vpack.c.b16 %v130, %v129
    %v143 = vpack.c.b16 %v132, %v131
    %v144 = vpack.c.b16 %v134, %v133
    %v145 = vpack.c.b16 %v136, %v135
    %v146 = vpack.c.b16 %v138, %v137
    %vm147 = vcmask 261120
    %v149 = vsel %vm147, %v99, 0
    %v152 = vsel %vm147, %v100, 0
    %v155 = vsel %vm147, %v101, 0
    %v158 = vsel %vm147, %v102, 0
    %v161 = vsel %vm147, %v103, 0
    %v164 = vsel %vm147, %v104, 0
    %v167 = vsel %vm147, %v105, 0
    %v170 = vsel %vm147, %v106, 0
    %v173 = vsel %vm147, %v139, 0
    %v176 = vsel %vm147, %v140, 0
    %v179 = vsel %vm147, %v141, 0
    %v182 = vsel %vm147, %v142, 0
    %v185 = vsel %vm147, %v143, 0
    %v188 = vsel %vm147, %v144, 0
    %v191 = vsel %vm147, %v145, 0
    %v194 = vsel %vm147, %v146, 0
    %196 = vmatpush.bf16.xpose.msra.mxu0 %v194
    %197 = vmatpush.bf16.xpose.msra.mxu0 %v191
    %198 = vmatpush.bf16.xpose.msra.mxu0 %v188
    %199 = vmatpush.bf16.xpose.msra.mxu0 %v185
    %200 = vmatpush.bf16.xpose.msra.mxu0 %v182
    %201 = vmatpush.bf16.xpose.msra.mxu0 %v179
    %202 = vmatpush.bf16.xpose.msra.mxu0 %v176
    %203 = vmatpush.bf16.xpose.msra.mxu0 %v173
    %204 = vmatmul.bf16.gmra.mxu0 %v149
    %v205 = vpop.f32.mrf.mxu0
    %v206 = vadd.f32 0.2, %v205
    %v207 = vpop.f32.mrf.mxu0
    %v208 = vadd.f32 0.2, %v207
    %209 = vmatmul.bf16.gmra.mxu0 %v152
    %v210 = vpop.f32.mrf.mxu0
    %v211 = vadd.f32 0.2, %v210
    %v212 = vpop.f32.mrf.mxu0
    %v213 = vadd.f32 0.2, %v212
    %214 = vmatmul.bf16.gmra.mxu0 %v155
    %v215 = vpop.f32.mrf.mxu0
    %v216 = vadd.f32 0.2, %v215
    %v217 = vpop.f32.mrf.mxu0
    %v218 = vadd.f32 0.2, %v217
    %219 = vmatmul.bf16.gmra.mxu0 %v158
    %v220 = vpop.f32.mrf.mxu0
    %v221 = vadd.f32 0.2, %v220
    %v222 = vpop.f32.mrf.mxu0
    %v223 = vadd.f32 0.2, %v222
    %224 = vmatmul.bf16.gmra.mxu0 %v161
    %v225 = vpop.f32.mrf.mxu0
    %v226 = vadd.f32 0.2, %v225
    %v227 = vpop.f32.mrf.mxu0
    %v228 = vadd.f32 0.2, %v227
    %229 = vmatmul.bf16.gmra.mxu0 %v164
    %v230 = vpop.f32.mrf.mxu0
    %v231 = vadd.f32 0.2, %v230
    %v232 = vpop.f32.mrf.mxu0
    %v233 = vadd.f32 0.2, %v232
    %234 = vmatmul.bf16.gmra.mxu0 %v167
    %v235 = vpop.f32.mrf.mxu0
    %v236 = vadd.f32 0.2, %v235
    %v237 = vpop.f32.mrf.mxu0
    %v238 = vadd.f32 0.2, %v237
    %239 = vmatmul.bf16.gmra.mxu0 %v170
    %v240 = vpop.f32.mrf.mxu0
    %v241 = vadd.f32 0.2, %v240
    %v242 = vpop.f32.mrf.mxu0
    %v243 = vadd.f32 0.2, %v242
    %244 = vdwg.mxu0
    %246 = vset.pattern.permute.xlu0 0
    %247 = vperm.xlu0 %246, %v50
    %v248 = vpop.permute.xlu0 %247
    %251 = vset.pattern.permute.xlu0 0
    %252 = vperm.xlu0 %251, %v51
    %v253 = vpop.permute.xlu0 %252
    %256 = vset.pattern.permute.xlu0 0
    %257 = vperm.xlu0 %256, %v52
    %v258 = vpop.permute.xlu0 %257
    %261 = vset.pattern.permute.xlu0 0
    %262 = vperm.xlu0 %261, %v53
    %v263 = vpop.permute.xlu0 %262
    %266 = vset.pattern.permute.xlu0 0
    %267 = vperm.xlu0 %266, %v54
    %v268 = vpop.permute.xlu0 %267
    %271 = vset.pattern.permute.xlu0 0
    %272 = vperm.xlu0 %271, %v55
    %v273 = vpop.permute.xlu0 %272
    %276 = vset.pattern.permute.xlu0 0
    %277 = vperm.xlu0 %276, %v56
    %v278 = vpop.permute.xlu0 %277
    %281 = vset.pattern.permute.xlu0 0
    %282 = vperm.xlu0 %281, %v57
    %v283 = vpop.permute.xlu0 %282
    %286 = vset.pattern.permute.xlu0 0
    %287 = vperm.xlu0 %286, %v58
    %v288 = vpop.permute.xlu0 %287
    %291 = vset.pattern.permute.xlu0 0
    %292 = vperm.xlu0 %291, %v59
    %v293 = vpop.permute.xlu0 %292
    %296 = vset.pattern.permute.xlu0 0
    %297 = vperm.xlu0 %296, %v60
    %v298 = vpop.permute.xlu0 %297
    %301 = vset.pattern.permute.xlu0 0
    %302 = vperm.xlu0 %301, %v61
    %v303 = vpop.permute.xlu0 %302
    %306 = vset.pattern.permute.xlu0 0
    %307 = vperm.xlu0 %306, %v62
    %v308 = vpop.permute.xlu0 %307
    %311 = vset.pattern.permute.xlu0 0
    %312 = vperm.xlu0 %311, %v63
    %v313 = vpop.permute.xlu0 %312
    %316 = vset.pattern.permute.xlu0 0
    %317 = vperm.xlu0 %316, %v64
    %v318 = vpop.permute.xlu0 %317
    %321 = vset.pattern.permute.xlu0 0
    %322 = vperm.xlu0 %321, %v65
    %v323 = vpop.permute.xlu0 %322
    %v325 = vsub.f32 %v206, %v248
    %v326 = vsub.f32 %v208, %v253
    %v327 = vsub.f32 %v211, %v258
    %v328 = vsub.f32 %v213, %v263
    %v329 = vsub.f32 %v216, %v268
    %v330 = vsub.f32 %v218, %v273
    %v331 = vsub.f32 %v221, %v278
    %v332 = vsub.f32 %v223, %v283
    %v333 = vsub.f32 %v226, %v288
    %v334 = vsub.f32 %v228, %v293
    %v335 = vsub.f32 %v231, %v298
    %v336 = vsub.f32 %v233, %v303
    %v337 = vsub.f32 %v236, %v308
    %v338 = vsub.f32 %v238, %v313
    %v339 = vsub.f32 %v241, %v318
    %v340 = vsub.f32 %v243, %v323
    %v341 = vmax.f32 %v325, 0.0
    %v342 = vmax.f32 %v326, 0.0
    %v343 = vmax.f32 %v327, 0.0
    %v344 = vmax.f32 %v328, 0.0
    %v345 = vmax.f32 %v329, 0.0
    %v346 = vmax.f32 %v330, 0.0
    %v347 = vmax.f32 %v331, 0.0
    %v348 = vmax.f32 %v332, 0.0
    %v349 = vmax.f32 %v333, 0.0
    %v350 = vmax.f32 %v334, 0.0
    %v351 = vmax.f32 %v335, 0.0
    %v352 = vmax.f32 %v336, 0.0
    %v353 = vmax.f32 %v337, 0.0
    %v354 = vmax.f32 %v338, 0.0
    %v355 = vmax.f32 %v339, 0.0
    %v356 = vmax.f32 %v340, 0.0
    %v358 = vperm.slane %v66, 0
    %v360 = vsub.f32 %v206, %v358
    %v361 = vsub.f32 %v208, %v358
    %v362 = vsub.f32 %v211, %v358
    %v363 = vsub.f32 %v213, %v358
    %v364 = vsub.f32 %v216, %v358
    %v365 = vsub.f32 %v218, %v358
    %v366 = vsub.f32 %v221, %v358
    %v367 = vsub.f32 %v223, %v358
    %v368 = vsub.f32 %v226, %v358
    %v369 = vsub.f32 %v228, %v358
    %v370 = vsub.f32 %v231, %v358
    %v371 = vsub.f32 %v233, %v358
    %v372 = vsub.f32 %v236, %v358
    %v373 = vsub.f32 %v238, %v358
    %v374 = vsub.f32 %v241, %v358
    %v375 = vsub.f32 %v243, %v358
    %v376 = vmax.f32 %v360, 0.0
    %v377 = vmax.f32 %v361, 0.0
    %v378 = vmax.f32 %v362, 0.0
    %v379 = vmax.f32 %v363, 0.0
    %v380 = vmax.f32 %v364, 0.0
    %v381 = vmax.f32 %v365, 0.0
    %v382 = vmax.f32 %v366, 0.0
    %v383 = vmax.f32 %v367, 0.0
    %v384 = vmax.f32 %v368, 0.0
    %v385 = vmax.f32 %v369, 0.0
    %v386 = vmax.f32 %v370, 0.0
    %v387 = vmax.f32 %v371, 0.0
    %v388 = vmax.f32 %v372, 0.0
    %v389 = vmax.f32 %v373, 0.0
    %v390 = vmax.f32 %v374, 0.0
    %v391 = vmax.f32 %v375, 0.0
    %v392 = vlaneseq
    %v393 = vshrl.u32 %v392, 7
    %v394 = vadd.s32 %v393, 8
    %v395 = vadd.s32 %v393, 16
    %v396 = vadd.s32 %v393, 24
    %v397 = vadd.s32 %v393, 32
    %v398 = vadd.s32 %v393, 40
    %v399 = vadd.s32 %v393, 48
    %v400 = vadd.s32 %v393, 56
    %v401 = vadd.s32 %v393, 64
    %v402 = vadd.s32 %v393, 72
    %v403 = vadd.s32 %v393, 80
    %v404 = vadd.s32 %v393, 88
    %v405 = vadd.s32 %v393, 96
    %v406 = vadd.s32 %v393, 104
    %v407 = vadd.s32 %v393, 112
    %v408 = vadd.s32 %v393, 120
    %s409 = smul.u32 0, 128
    %v410 = vstv %s409
    %v411 = vadd.s32 %v393, %v410
    %v412 = vadd.s32 %v394, %v410
    %v413 = vadd.s32 %v395, %v410
    %v414 = vadd.s32 %v396, %v410
    %v415 = vadd.s32 %v397, %v410
    %v416 = vadd.s32 %v398, %v410
    %v417 = vadd.s32 %v399, %v410
    %v418 = vadd.s32 %v400, %v410
    %v419 = vadd.s32 %v401, %v410
    %v420 = vadd.s32 %v402, %v410
    %v421 = vadd.s32 %v403, %v410
    %v422 = vadd.s32 %v404, %v410
    %v423 = vadd.s32 %v405, %v410
    %v424 = vadd.s32 %v406, %v410
    %v425 = vadd.s32 %v407, %v410
    %v426 = vadd.s32 %v408, %v410
    %v427 = vlaneseq
    %v428 = vand.u32 %v427, 127
    %s429 = smul.u32 0, 128
    %v430 = vstv %s429
    %v431 = vadd.s32 %v428, %v430
    %vm432 = vcmp.eq.s32.totalorder %v411, %v431
    %vm433 = vcmp.eq.s32.totalorder %v412, %v431
    %vm434 = vcmp.eq.s32.totalorder %v413, %v431
    %vm435 = vcmp.eq.s32.totalorder %v414, %v431
    %vm436 = vcmp.eq.s32.totalorder %v415, %v431
    %vm437 = vcmp.eq.s32.totalorder %v416, %v431
    %vm438 = vcmp.eq.s32.totalorder %v417, %v431
    %vm439 = vcmp.eq.s32.totalorder %v418, %v431
    %vm440 = vcmp.eq.s32.totalorder %v419, %v431
    %vm441 = vcmp.eq.s32.totalorder %v420, %v431
    %vm442 = vcmp.eq.s32.totalorder %v421, %v431
    %vm443 = vcmp.eq.s32.totalorder %v422, %v431
    %vm444 = vcmp.eq.s32.totalorder %v423, %v431
    %vm445 = vcmp.eq.s32.totalorder %v424, %v431
    %vm446 = vcmp.eq.s32.totalorder %v425, %v431
    %vm447 = vcmp.eq.s32.totalorder %v426, %v431
    %vm448 = vcmp.ge.s32.totalorder %v411, 8
    %vm449 = vcmp.ge.s32.totalorder %v412, 8
    %vm450 = vcmp.ge.s32.totalorder %v413, 8
    %vm451 = vcmp.ge.s32.totalorder %v414, 8
    %vm452 = vcmp.ge.s32.totalorder %v415, 8
    %vm453 = vcmp.ge.s32.totalorder %v416, 8
    %vm454 = vcmp.ge.s32.totalorder %v417, 8
    %vm455 = vcmp.ge.s32.totalorder %v418, 8
    %vm456 = vcmp.ge.s32.totalorder %v419, 8
    %vm457 = vcmp.ge.s32.totalorder %v420, 8
    %vm458 = vcmp.ge.s32.totalorder %v421, 8
    %vm459 = vcmp.ge.s32.totalorder %v422, 8
    %vm460 = vcmp.ge.s32.totalorder %v423, 8
    %vm461 = vcmp.ge.s32.totalorder %v424, 8
    %vm462 = vcmp.ge.s32.totalorder %v425, 8
    %vm463 = vcmp.ge.s32.totalorder %v426, 8
    %vm464 = vcmp.ge.s32.totalorder %v431, 8
    %vm465 = vmor %vm448, %vm464
    %vm466 = vmor %vm449, %vm464
    %vm467 = vmor %vm450, %vm464
    %vm468 = vmor %vm451, %vm464
    %vm469 = vmor %vm452, %vm464
    %vm470 = vmor %vm453, %vm464
    %vm471 = vmor %vm454, %vm464
    %vm472 = vmor %vm455, %vm464
    %vm473 = vmor %vm456, %vm464
    %vm474 = vmor %vm457, %vm464
    %vm475 = vmor %vm458, %vm464
    %vm476 = vmor %vm459, %vm464
    %vm477 = vmor %vm460, %vm464
    %vm478 = vmor %vm461, %vm464
    %vm479 = vmor %vm462, %vm464
    %vm480 = vmor %vm463, %vm464
    %vm481 = vmor %vm432, %vm465
    %vm482 = vmor %vm433, %vm466
    %vm483 = vmor %vm434, %vm467
    %vm484 = vmor %vm435, %vm468
    %vm485 = vmor %vm436, %vm469
    %vm486 = vmor %vm437, %vm470
    %vm487 = vmor %vm438, %vm471
    %vm488 = vmor %vm439, %vm472
    %vm489 = vmor %vm440, %vm473
    %vm490 = vmor %vm441, %vm474
    %vm491 = vmor %vm442, %vm475
    %vm492 = vmor %vm443, %vm476
    %vm493 = vmor %vm444, %vm477
    %vm494 = vmor %vm445, %vm478
    %vm495 = vmor %vm446, %vm479
    %vm496 = vmor %vm447, %vm480
    %v497 = vsel %vm481, 0.0, %v341
    %v498 = vsel %vm482, 0.0, %v342
    %v499 = vsel %vm483, 0.0, %v343
    %v500 = vsel %vm484, 0.0, %v344
    %v501 = vsel %vm485, 0.0, %v345
    %v502 = vsel %vm486, 0.0, %v346
    %v503 = vsel %vm487, 0.0, %v347
    %v504 = vsel %vm488, 0.0, %v348
    %v505 = vsel %vm489, 0.0, %v349
    %v506 = vsel %vm490, 0.0, %v350
    %v507 = vsel %vm491, 0.0, %v351
    %v508 = vsel %vm492, 0.0, %v352
    %v509 = vsel %vm493, 0.0, %v353
    %v510 = vsel %vm494, 0.0, %v354
    %v511 = vsel %vm495, 0.0, %v355
    %v512 = vsel %vm496, 0.0, %v356
    %v513 = vsel %vm481, 0.0, %v376
    %v514 = vsel %vm482, 0.0, %v377
    %v515 = vsel %vm483, 0.0, %v378
    %v516 = vsel %vm484, 0.0, %v379
    %v517 = vsel %vm485, 0.0, %v380
    %v518 = vsel %vm486, 0.0, %v381
    %v519 = vsel %vm487, 0.0, %v382
    %v520 = vsel %vm488, 0.0, %v383
    %v521 = vsel %vm489, 0.0, %v384
    %v522 = vsel %vm490, 0.0, %v385
    %v523 = vsel %vm491, 0.0, %v386
    %v524 = vsel %vm492, 0.0, %v387
    %v525 = vsel %vm493, 0.0, %v388
    %v526 = vsel %vm494, 0.0, %v389
    %v527 = vsel %vm495, 0.0, %v390
    %v528 = vsel %vm496, 0.0, %v391
    %v529 = vadd.f32 %v497, %v513
    %v530 = vadd.f32 %v498, %v514
    %v531 = vadd.f32 %v499, %v515
    %v532 = vadd.f32 %v500, %v516
    %v533 = vadd.f32 %v501, %v517
    %v534 = vadd.f32 %v502, %v518
    %v535 = vadd.f32 %v503, %v519
    %v536 = vadd.f32 %v504, %v520
    %v537 = vadd.f32 %v505, %v521
    %v538 = vadd.f32 %v506, %v522
    %v539 = vadd.f32 %v507, %v523
    %v540 = vadd.f32 %v508, %v524
    %v541 = vadd.f32 %v509, %v525
    %v542 = vadd.f32 %v510, %v526
    %v543 = vadd.f32 %v511, %v527
    %v544 = vadd.f32 %v512, %v528
    %v545 = vadd.f32 %v529, %v530
    %v546 = vadd.f32 %v545, %v531
    %v547 = vadd.f32 %v546, %v532
    %v548 = vadd.f32 %v547, %v533
    %v549 = vadd.f32 %v548, %v534
    %v550 = vadd.f32 %v549, %v535
    %v551 = vadd.f32 %v550, %v536
    %v552 = vadd.f32 %v551, %v537
    %v553 = vadd.f32 %v552, %v538
    %v554 = vadd.f32 %v553, %v539
    %v555 = vadd.f32 %v554, %v540
    %v556 = vadd.f32 %v555, %v541
    %v557 = vadd.f32 %v556, %v542
    %v558 = vadd.f32 %v557, %v543
    %v559 = vadd.f32 %v558, %v544
    %v560 = vrot.slane %v559, 4
    %v561 = vadd.f32 %v559, %v560
    %v562 = vrot.slane %v561, 2
    %v563 = vadd.f32 %v561, %v562
    %v564 = vrot.slane %v563, 1
    %v565 = vadd.f32 %v563, %v564
    %566 = vst [vmem:[#allocation2] sm:$0x1] %v565
    // Predicated region
    $region18: #{tpu_custom_call.1} parent=1 // pred_check
      _
    $region19: #{tpu_custom_call.1} parent=1 // pred_check_branch
      %568 = sbr.rel (0) target = $region21
    $region20: #{tpu_custom_call.1} parent=1 // pred_region
      %570 = vsyncadd [#allocation3], 0
      %s572 = sshll.u32 [#allocation2], 4
      %s573 = int_to_ptr.vmem [resolvable:$true] %s572
      %s574 = sshll.u32 %s4, 4
      %s575 = int_to_ptr.hbm [resolvable:$true] %s574
      %577 = dma.vmem_to_hbm [thread:$0]  %s573, 16, %s575, [#allocation3]
    $region21: #{tpu_custom_call.1} parent=1 // pred_fallthru
      _
    // Predicated region
    $region22: #{tpu_custom_call.1} parent=1 // pred_check
      _
    $region23: #{tpu_custom_call.1} parent=1 // pred_check_branch
      %579 = sbr.rel (0) target = $region25
    $region24: #{tpu_custom_call.1} parent=1 // pred_region
      %581 = dma.done [#allocation3], 16
    $region25: #{tpu_custom_call.1} parent=1 // pred_fallthru
      _
    %582 = vsyncpa [#allocation3], 1

</llo_original>
